<compile_context>
chip_gen: v5e
topology: v5e:2x2
jax: 0.10.0
libtpu: 0.0.40
codegen_flags: <defaults>
</compile_context>

<pallas_src>
import jax
import jax.numpy as jnp
from jax import lax
from jax.experimental import pallas as pl
from jax.experimental.pallas import tpu as pltpu


_LANE = 128
_SUBLANE = 8
_SUB_B = 256          # in-kernel batch sub-tile; bounds the (sub, Hp) f32 intermediate


def _round_up(n, m):
    return ((n + m - 1) // m) * m


def _g_kernel(x_ref, w1_ref, b1_ref, w2_ref, b2_ref, o_ref):
    block_b = x_ref.shape[0]

    def _chunk(rows):
        # layer 1: (rows, In) @ (In, Hp) + (1, Hp)   -> f32 accumulation
        h = jnp.dot(x_ref[rows, :], w1_ref[...],
                    preferred_element_type=jnp.float32) + b1_ref[...]
        # layer 2: (rows, Hp) @ (Hp, Out) + (1, Out) -> f32 accumulation
        y = jnp.dot(h, w2_ref[...],
                    preferred_element_type=jnp.float32) + b2_ref[...]
        o_ref[rows, :] = y.astype(o_ref.dtype)

    if block_b > _SUB_B and block_b % _SUB_B == 0:
        # Bound the live range of the f32 intermediate: each 256-row chunk of
        # mm1 feeds mm2 immediately instead of materializing a (block_b, Hp)
        # slab in VMEM.  Short fixed trip count -> unrolled for LLO visibility.
        nb = block_b // _SUB_B

        def body(i, carry):
            start = pl.multiple_of(i * _SUB_B, _SUB_B)
            _chunk(pl.ds(start, _SUB_B))
            return carry

        lax.fori_loop(0, nb, body, 0, unroll=True)
    else:
        _chunk(slice(None))


def _vmem_budget_bytes():
    """Generation-aware usable-VMEM budget (bytes)."""
    cap = None
    try:
        info = pltpu.get_tpu_info()
        cap = getattr(info, "vmem_capacity_bytes", None)
    except Exception:
        cap = None
    if not cap:
        cap = 64 * 1024 * 1024          # conservative (v7x-sized) fallback
    # ~3/8 of physical: ~48 MiB on 128 MiB chips (v5e/v6e), ~24 MiB on v7x.
    # Leaves headroom for per-TensorCore duplication and compiler scratch.
    return max(16 * 1024 * 1024, (cap * 3) // 8)


def _pick_block_b(In, Hp, Out, budget_bytes, cap=1024):
    """Largest power-of-two batch tile (8 <= tb <= cap) whose working set fits
    the VMEM budget.  Counts double-buffered x/o tiles, the sub-tiled f32
    intermediate, and the weight/bias operands *twice* (BlockSpec inputs get
    two buffers even with a constant index_map)."""
    weight_bytes = 2 * 4 * (In * Hp + Hp + Hp * Out + Out)
    tb = cap
    while tb > _SUBLANE:
        inter_bytes = 4 * min(tb, _SUB_B) * Hp
        tile_bytes = 4 * (2 * tb * In + 2 * tb * Out) + inter_bytes
        if weight_bytes + tile_bytes <= budget_bytes:
            break
        tb //= 2
    return tb


def g_forward(x, w1, b1, w2, b2, *, max_block_b=None):
    """Two-layer MLP forward, fully inside one Pallas kernel.

    x  : (B, In)   float32
    w1 : (In, H)   float32   (== PyTorch weight1.T)
    b1 : (1, H)    float32
    w2 : (H, Out)  float32   (== PyTorch weight2.T)
    b2 : (1, Out)  float32
    returns (B, Out) float32
    """
    B, In = x.shape
    H = w1.shape[1]
    Out = w2.shape[1]

    # ---- pad hidden dim to a multiple of 128 (exact: padded cols/rows are 0) ----
    Hp = max(_LANE, _round_up(H, _LANE))
    if Hp != H:
        w1 = jnp.pad(w1, ((0, 0), (0, Hp - H)))
        b1 = jnp.pad(b1, ((0, 0), (0, Hp - H)))
        w2 = jnp.pad(w2, ((0, Hp - H), (0, 0)))

    # ---- batch tiling; no padding of x, Pallas masks the partial last block ----
    vmem_limit = _vmem_budget_bytes()
    cap = max_block_b if max_block_b is not None else 1024
    block_b = _pick_block_b(In, Hp, Out, vmem_limit - 2 * 1024 * 1024, cap=cap)
    if B <= block_b:
        block_b = B                      # full-array batch block (always legal)
    grid = (pl.cdiv(B, block_b),)

    cost = pl.CostEstimate(
        flops=2 * B * (In * Hp + Hp * Out) + B * (Hp + Out),
        transcendentals=0,
        bytes_accessed=4 * (B * In + In * Hp + Hp + Hp * Out + Out + B * Out),
    )

    return pl.pallas_call(
        _g_kernel,
        out_shape=jax.ShapeDtypeStruct((B, Out), jnp.float32),
        grid=grid,
        in_specs=[
            pl.BlockSpec((block_b, In), lambda i: (i, 0)),   # x tile, pipelined
            pl.BlockSpec((In, Hp), lambda i: (0, 0)),        # resident weights
            pl.BlockSpec((1, Hp), lambda i: (0, 0)),
            pl.BlockSpec((Hp, Out), lambda i: (0, 0)),
            pl.BlockSpec((1, Out), lambda i: (0, 0)),
        ],
        out_specs=pl.BlockSpec((block_b, Out), lambda i: (i, 0)),  # real Out cols only
        compiler_params=pltpu.CompilerParams(
            # Batch grid axis is independent -> megacore sharding on v7x.
            dimension_semantics=("parallel",),
            vmem_limit_bytes=vmem_limit,
        ),
        cost_estimate=cost,
    )(x, w1, b1, w2, b2)


def init_params(key, g_model_ip_size, g_model_op_size, hidden_features):
    """Deterministic synthetic parameters mimicking torch.nn.Linear init
    (uniform in [-1/sqrt(fan_in), 1/sqrt(fan_in)])."""
    k1, k2, k3, k4 = jax.random.split(key, 4)
    bound1 = 1.0 / jnp.sqrt(jnp.float32(g_model_ip_size))
    bound2 = 1.0 / jnp.sqrt(jnp.float32(hidden_features))
    w1 = jax.random.uniform(k1, (g_model_ip_size, hidden_features),
                            jnp.float32, -bound1, bound1)
    b1 = jax.random.uniform(k2, (1, hidden_features),
                            jnp.float32, -bound1, bound1)
    w2 = jax.random.uniform(k3, (hidden_features, g_model_op_size),
                            jnp.float32, -bound2, bound2)
    b2 = jax.random.uniform(k4, (1, g_model_op_size),
                            jnp.float32, -bound2, bound2)
    return w1, b1, w2, b2


if __name__ == "__main__":
    # Small shapes consistent with the module; hidden_features uses the module
    # default (500) so the 128-alignment padding path is exercised.
    batch = 8
    g_model_ip_size = 16
    hidden_features = 500
    g_model_op_size = 8

    key = jax.random.PRNGKey(0)
    kx, kp, kx2 = jax.random.split(key, 3)
    x = jax.random.normal(kx, (batch, g_model_ip_size), jnp.float32)
    w1, b1, w2, b2 = init_params(kp, g_model_ip_size, g_model_op_size,
                                 hidden_features)

    out = jax.block_until_ready(g_forward(x, w1, b1, w2, b2))
    ref = (x @ w1 + b1) @ w2 + b2
    assert out.shape == (batch, g_model_op_size)
    assert jnp.allclose(out, ref, atol=1e-4, rtol=1e-4)

    # Second (still small) run exercising the multi-step grid, the partial
    # last batch block (no jnp.pad of x) and the in-kernel 256-row sub-tiling.
    big_b = 520
    xb = jax.random.normal(kx2, (big_b, g_model_ip_size), jnp.float32)
    outb = jax.block_until_ready(g_forward(xb, w1, b1, w2, b2, max_block_b=512))
    refb = (xb @ w1 + b1) @ w2 + b2
    assert outb.shape == (big_b, g_model_op_size)
    assert jnp.allclose(outb, refb, atol=1e-4, rtol=1e-4)

    print("KERNEL_OK")
</pallas_src>

<mosaic_0001>
module attributes {stable_mosaic.version = 11 : i64} {
  func.func @_g_kernel(%arg0: i32, %arg1: memref<8x16xf32, #tpu.memory_space<vmem>>, %arg2: memref<16x512xf32, #tpu.memory_space<vmem>>, %arg3: memref<1x512xf32, #tpu.memory_space<vmem>>, %arg4: memref<512x8xf32, #tpu.memory_space<vmem>>, %arg5: memref<1x8xf32, #tpu.memory_space<vmem>>, %arg6: memref<8x8xf32, #tpu.memory_space<vmem>>) attributes {dimension_semantics = [#tpu.dimension_semantics<parallel>], iteration_bounds = array<i64: 1>, scalar_prefetch = 0 : i64, scratch_operands = 0 : i64, tpu.core_type = #tpu.core_type<tc>, window_params = [{transform_indices = @transform_0, window_bounds = array<i64: 8, 16>}, {pipeline_mode = #tpu.pipeline_mode<synchronous>, transform_indices = @transform_1, window_bounds = array<i64: 16, 512>}, {pipeline_mode = #tpu.pipeline_mode<synchronous>, transform_indices = @transform_2, window_bounds = array<i64: 1, 512>}, {pipeline_mode = #tpu.pipeline_mode<synchronous>, transform_indices = @transform_3, window_bounds = array<i64: 512, 8>}, {pipeline_mode = #tpu.pipeline_mode<synchronous>, transform_indices = @transform_4, window_bounds = array<i64: 1, 8>}, {transform_indices = @transform_5, window_bounds = array<i64: 8, 8>}]} {
    %c0 = arith.constant 0 : index
    %c0_0 = arith.constant 0 : index
    %0 = vector.load %arg1[%c0, %c0_0] : memref<8x16xf32, #tpu.memory_space<vmem>>, vector<8x16xf32>
    %c0_1 = arith.constant 0 : index
    %c0_2 = arith.constant 0 : index
    %1 = vector.load %arg2[%c0_1, %c0_2] : memref<16x512xf32, #tpu.memory_space<vmem>>, vector<16x512xf32>
    %cst = arith.constant dense<0.000000e+00> : vector<8x512xf32>
    %2 = tpu.matmul %0, %1, %cst {dimension_numbers = #tpu.dot_dimension_numbers<[1], [0], [0], [1], [0, 0, 1, 1], [], []>} : vector<8x16xf32>, vector<16x512xf32>, vector<8x512xf32> -> vector<8x512xf32>
    %c0_3 = arith.constant 0 : index
    %c0_4 = arith.constant 0 : index
    %3 = vector.load %arg3[%c0_3, %c0_4] : memref<1x512xf32, #tpu.memory_space<vmem>>, vector<1x512xf32>
    %4 = vector.broadcast %3 : vector<1x512xf32> to vector<8x512xf32>
    %5 = arith.addf %2, %4 : vector<8x512xf32>
    %c0_5 = arith.constant 0 : index
    %c0_6 = arith.constant 0 : index
    %6 = vector.load %arg4[%c0_5, %c0_6] : memref<512x8xf32, #tpu.memory_space<vmem>>, vector<512x8xf32>
    %cst_7 = arith.constant dense<0.000000e+00> : vector<8x8xf32>
    %7 = tpu.matmul %5, %6, %cst_7 {dimension_numbers = #tpu.dot_dimension_numbers<[1], [0], [0], [1], [0, 0, 1, 1], [], []>} : vector<8x512xf32>, vector<512x8xf32>, vector<8x8xf32> -> vector<8x8xf32>
    %c0_8 = arith.constant 0 : index
    %c0_9 = arith.constant 0 : index
    %8 = vector.load %arg5[%c0_8, %c0_9] : memref<1x8xf32, #tpu.memory_space<vmem>>, vector<1x8xf32>
    %9 = vector.broadcast %8 : vector<1x8xf32> to vector<8x8xf32>
    %10 = arith.addf %7, %9 : vector<8x8xf32>
    %c0_10 = arith.constant 0 : index
    %c0_11 = arith.constant 0 : index
    %11 = vector.load %arg6[%c0_10, %c0_11] : memref<8x8xf32, #tpu.memory_space<vmem>>, vector<8x8xf32>
    tpu.vector_store %arg6[%c0_10, %c0_11], %10 {strides = array<i32>} : memref<8x8xf32, #tpu.memory_space<vmem>>, vector<8x8xf32>,
    return
  }
  func.func @transform_0(%arg0: i32) -> (i32, i32) {
    %c0_i32 = arith.constant 0 : i32
    %c0_i32_0 = arith.constant 0 : i32
    return %arg0, %c0_i32 : i32, i32
  }
  func.func @transform_1(%arg0: i32) -> (i32, i32) {
    %c0_i32 = arith.constant 0 : i32
    %c0_i32_0 = arith.constant 0 : i32
    %c0_i32_1 = arith.constant 0 : i32
    return %c0_i32, %c0_i32_0 : i32, i32
  }
  func.func @transform_2(%arg0: i32) -> (i32, i32) {
    %c0_i32 = arith.constant 0 : i32
    %c0_i32_0 = arith.constant 0 : i32
    %c0_i32_1 = arith.constant 0 : i32
    return %c0_i32, %c0_i32_0 : i32, i32
  }
  func.func @transform_3(%arg0: i32) -> (i32, i32) {
    %c0_i32 = arith.constant 0 : i32
    %c0_i32_0 = arith.constant 0 : i32
    %c0_i32_1 = arith.constant 0 : i32
    return %c0_i32, %c0_i32_0 : i32, i32
  }
  func.func @transform_4(%arg0: i32) -> (i32, i32) {
    %c0_i32 = arith.constant 0 : i32
    %c0_i32_0 = arith.constant 0 : i32
    %c0_i32_1 = arith.constant 0 : i32
    return %c0_i32, %c0_i32_0 : i32, i32
  }
  func.func @transform_5(%arg0: i32) -> (i32, i32) {
    %c0_i32 = arith.constant 0 : i32
    %c0_i32_0 = arith.constant 0 : i32
    return %arg0, %c0_i32 : i32, i32
  }
}

</mosaic_0001>

<llo_original>
// kernel: tpu_custom_call.1
$region0: #{tpu_custom_call.1}
  #allocation0 [shape = 'u32[]', space=smem, size = 0x4, offset = 0x4, fixed_abs, tag = 'smem constant byte address 0x4 - core index']
  #allocation1 [shape = 'u32[72,128]{1,0:T(1,128)}', space=vmem, size = 0x9000, scoped, tag = 'internal scratch']
  %s0 = inlined_call_operand.vmem [shape: f32[8,16], index: 0, kind: input, shape index: {}]
  %s1 = inlined_call_operand.vmem [shape: f32[16,512], index: 1, kind: input, shape index: {}]
  %s2 = inlined_call_operand.vmem [shape: f32[1,512], index: 2, kind: input, shape index: {}]
  %s3 = inlined_call_operand.vmem [shape: f32[512,8], index: 3, kind: input, shape index: {}]
  %s4 = inlined_call_operand.vmem [shape: f32[1,8], index: 4, kind: input, shape index: {}]
  %s5 = inlined_call_operand.hbm [shape: f32[8,8], index: 5, kind: output, shape index: {}]
  %s6 = sld [smem:[#allocation0]]
  $region30: #{tpu_custom_call.1} parent=0
    _
  %s8 = ssub.s32 1, %s6
  %s9 = scalar_select 0, %s8, %s6
  $region1: #{tpu_custom_call.1} parent=0
    #allocation2 [shape = 'u8[4096]{0}', space=vmem, size = 0x1000, scoped, tag = 'output window, operand 0, single buffered']
    #allocation3 [shape = 's32[1]{0}', space=sflag, size = 0x4, scoped, tag = 'scoped memory for tpu_custom_call.1']
    %10 = vsyncpa [#allocation3], 0
    // Predicated region
    $region2: #{tpu_custom_call.1} parent=1 // pred_check
      _
    $region3: #{tpu_custom_call.1} parent=1 // pred_check_branch
      %12 = sbr.rel (0) target = $region5
    $region4: #{tpu_custom_call.1} parent=1 // pred_region
      _
    $region5: #{tpu_custom_call.1} parent=1 // pred_fallthru
      _
    // Predicated region
    $region6: #{tpu_custom_call.1} parent=1 // pred_check
      _
    $region7: #{tpu_custom_call.1} parent=1 // pred_check_branch
      %14 = sbr.rel (0) target = $region9
    $region8: #{tpu_custom_call.1} parent=1 // pred_region
      _
    $region9: #{tpu_custom_call.1} parent=1 // pred_fallthru
      _
    // Predicated region
    $region10: #{tpu_custom_call.1} parent=1 // pred_check
      _
    $region11: #{tpu_custom_call.1} parent=1 // pred_check_branch
      %16 = sbr.rel (0) target = $region13
    $region12: #{tpu_custom_call.1} parent=1 // pred_region
      _
    $region13: #{tpu_custom_call.1} parent=1 // pred_fallthru
      _
    // Predicated region
    $region14: #{tpu_custom_call.1} parent=1 // pred_check
      _
    $region15: #{tpu_custom_call.1} parent=1 // pred_check_branch
      %18 = sbr.rel (0) target = $region17
    $region16: #{tpu_custom_call.1} parent=1 // pred_region
      _
    $region17: #{tpu_custom_call.1} parent=1 // pred_fallthru
      _
    // Predicated region
    $region18: #{tpu_custom_call.1} parent=1 // pred_check
      _
    $region19: #{tpu_custom_call.1} parent=1 // pred_check_branch
      %20 = sbr.rel (0) target = $region21
    $region20: #{tpu_custom_call.1} parent=1 // pred_region
      _
    $region21: #{tpu_custom_call.1} parent=1 // pred_fallthru
      _
    %v21 = vld [vmem:[%s0] sm:$0xff]
    %v22 = vld [vmem:[%s1] sm:$0xff]
    %v23 = vld [vmem:[%s1 + $0x8] sm:$0xff]
    %v24 = vld [vmem:[%s1 + $0x10] sm:$0xff]
    %v25 = vld [vmem:[%s1 + $0x18] sm:$0xff]
    %v26 = vld [vmem:[%s1 + $0x20] sm:$0xff]
    %v27 = vld [vmem:[%s1 + $0x28] sm:$0xff]
    %v28 = vld [vmem:[%s1 + $0x30] sm:$0xff]
    %v29 = vld [vmem:[%s1 + $0x38] sm:$0xff]
    %v30 = vld [vmem:[%s2] sm:$0xf]
    %v32 = vperm.slane %v30, 0
    %v33 = vperm.slane %v30, 1
    %v34 = vperm.slane %v30, 2
    %v35 = vperm.slane %v30, 3
    %vm40 = vcmask 130048
    %v42 = vsel %vm40, %v21, 0
    %44 = vmatpush.msra.mxu0 0.0
    %45 = vmatpush.msra.mxu0 0.0
    %46 = vmatpush.msra.mxu0 0.0
    %47 = vmatpush.msra.mxu0 0.0
    %48 = vmatpush.msra.mxu0 0.0
    %49 = vmatpush.msra.mxu0 0.0
    %50 = vmatpush.msra.mxu0 0.0
    %51 = vmatpush.msra.mxu0 0.0
    %52 = vmatpush.msra.mxu0 0.0
    %53 = vmatpush.msra.mxu0 0.0
    %54 = vmatpush.msra.mxu0 0.0
    %55 = vmatpush.msra.mxu0 0.0
    %56 = vmatpush.msra.mxu0 0.0
    %57 = vmatpush.msra.mxu0 0.0
    %58 = vmatpush.msra.mxu0 %v26
    %59 = vmatpush.msra.mxu0 %v22
    %60 = vmatmul.f32.gmra.mxu0 %v42
    %v61 = vpop.f32.mrf.mxu0
    %v62 = vadd.f32 %v32, %v61
    %63 = vdwg.mxu0
    %64 = vmatpush.msra.mxu0 0.0
    %65 = vmatpush.msra.mxu0 0.0
    %66 = vmatpush.msra.mxu0 0.0
    %67 = vmatpush.msra.mxu0 0.0
    %68 = vmatpush.msra.mxu0 0.0
    %69 = vmatpush.msra.mxu0 0.0
    %70 = vmatpush.msra.mxu0 0.0
    %71 = vmatpush.msra.mxu0 0.0
    %72 = vmatpush.msra.mxu0 0.0
    %73 = vmatpush.msra.mxu0 0.0
    %74 = vmatpush.msra.mxu0 0.0
    %75 = vmatpush.msra.mxu0 0.0
    %76 = vmatpush.msra.mxu0 0.0
    %77 = vmatpush.msra.mxu0 0.0
    %78 = vmatpush.msra.mxu0 %v27
    %79 = vmatpush.msra.mxu0 %v23
    %80 = vmatmul.f32.gmra.mxu0 %v42
    %v81 = vpop.f32.mrf.mxu0
    %v82 = vadd.f32 %v33, %v81
    %83 = vdwg.mxu0
    %84 = vmatpush.msra.mxu0 0.0
    %85 = vmatpush.msra.mxu0 0.0
    %86 = vmatpush.msra.mxu0 0.0
    %87 = vmatpush.msra.mxu0 0.0
    %88 = vmatpush.msra.mxu0 0.0
    %89 = vmatpush.msra.mxu0 0.0
    %90 = vmatpush.msra.mxu0 0.0
    %91 = vmatpush.msra.mxu0 0.0
    %92 = vmatpush.msra.mxu0 0.0
    %93 = vmatpush.msra.mxu0 0.0
    %94 = vmatpush.msra.mxu0 0.0
    %95 = vmatpush.msra.mxu0 0.0
    %96 = vmatpush.msra.mxu0 0.0
    %97 = vmatpush.msra.mxu0 0.0
    %98 = vmatpush.msra.mxu0 %v28
    %99 = vmatpush.msra.mxu0 %v24
    %100 = vmatmul.f32.gmra.mxu0 %v42
    %v101 = vpop.f32.mrf.mxu0
    %v102 = vadd.f32 %v34, %v101
    %103 = vdwg.mxu0
    %104 = vmatpush.msra.mxu0 0.0
    %105 = vmatpush.msra.mxu0 0.0
    %106 = vmatpush.msra.mxu0 0.0
    %107 = vmatpush.msra.mxu0 0.0
    %108 = vmatpush.msra.mxu0 0.0
    %109 = vmatpush.msra.mxu0 0.0
    %110 = vmatpush.msra.mxu0 0.0
    %111 = vmatpush.msra.mxu0 0.0
    %112 = vmatpush.msra.mxu0 0.0
    %113 = vmatpush.msra.mxu0 0.0
    %114 = vmatpush.msra.mxu0 0.0
    %115 = vmatpush.msra.mxu0 0.0
    %116 = vmatpush.msra.mxu0 0.0
    %117 = vmatpush.msra.mxu0 0.0
    %118 = vmatpush.msra.mxu0 %v29
    %119 = vmatpush.msra.mxu0 %v25
    %120 = vmatmul.f32.gmra.mxu0 %v42
    %v121 = vpop.f32.mrf.mxu0
    %v122 = vadd.f32 %v35, %v121
    %123 = vdwg.mxu0
    %v124 = vld [vmem:[%s3] sm:$0xff]
    %v125 = vld [vmem:[%s3 + $0x8] sm:$0xff]
    %v126 = vld [vmem:[%s3 + $0x10] sm:$0xff]
    %v127 = vld [vmem:[%s3 + $0x18] sm:$0xff]
    %v128 = vld [vmem:[%s3 + $0x20] sm:$0xff]
    %v129 = vld [vmem:[%s3 + $0x28] sm:$0xff]
    %v130 = vld [vmem:[%s3 + $0x30] sm:$0xff]
    %v131 = vld [vmem:[%s3 + $0x38] sm:$0xff]
    %v132 = vld [vmem:[%s3 + $0x40] sm:$0xff]
    %v133 = vld [vmem:[%s3 + $0x48] sm:$0xff]
    %v134 = vld [vmem:[%s3 + $0x50] sm:$0xff]
    %v135 = vld [vmem:[%s3 + $0x58] sm:$0xff]
    %v136 = vld [vmem:[%s3 + $0x60] sm:$0xff]
    %v137 = vld [vmem:[%s3 + $0x68] sm:$0xff]
    %v138 = vld [vmem:[%s3 + $0x70] sm:$0xff]
    %v139 = vld [vmem:[%s3 + $0x78] sm:$0xff]
    %v140 = vld [vmem:[%s3 + $0x80] sm:$0xff]
    %v141 = vld [vmem:[%s3 + $0x88] sm:$0xff]
    %v142 = vld [vmem:[%s3 + $0x90] sm:$0xff]
    %v143 = vld [vmem:[%s3 + $0x98] sm:$0xff]
    %v144 = vld [vmem:[%s3 + $0xa0] sm:$0xff]
    %v145 = vld [vmem:[%s3 + $0xa8] sm:$0xff]
    %v146 = vld [vmem:[%s3 + $0xb0] sm:$0xff]
    %v147 = vld [vmem:[%s3 + $0xb8] sm:$0xff]
    %v148 = vld [vmem:[%s3 + $0xc0] sm:$0xff]
    %v149 = vld [vmem:[%s3 + $0xc8] sm:$0xff]
    %v150 = vld [vmem:[%s3 + $0xd0] sm:$0xff]
    %v151 = vld [vmem:[%s3 + $0xd8] sm:$0xff]
    %v152 = vld [vmem:[%s3 + $0xe0] sm:$0xff]
    %v153 = vld [vmem:[%s3 + $0xe8] sm:$0xff]
    %v154 = vld [vmem:[%s3 + $0xf0] sm:$0xff]
    %v155 = vld [vmem:[%s3 + $0xf8] sm:$0xff]
    %v156 = vld [vmem:[%s3 + $0x100] sm:$0xff]
    %v157 = vld [vmem:[%s3 + $0x108] sm:$0xff]
    %v158 = vld [vmem:[%s3 + $0x110] sm:$0xff]
    %v159 = vld [vmem:[%s3 + $0x118] sm:$0xff]
    %v160 = vld [vmem:[%s3 + $0x120] sm:$0xff]
    %v161 = vld [vmem:[%s3 + $0x128] sm:$0xff]
    %v162 = vld [vmem:[%s3 + $0x130] sm:$0xff]
    %v163 = vld [vmem:[%s3 + $0x138] sm:$0xff]
    %v164 = vld [vmem:[%s3 + $0x140] sm:$0xff]
    %v165 = vld [vmem:[%s3 + $0x148] sm:$0xff]
    %v166 = vld [vmem:[%s3 + $0x150] sm:$0xff]
    %v167 = vld [vmem:[%s3 + $0x158] sm:$0xff]
    %v168 = vld [vmem:[%s3 + $0x160] sm:$0xff]
    %v169 = vld [vmem:[%s3 + $0x168] sm:$0xff]
    %v170 = vld [vmem:[%s3 + $0x170] sm:$0xff]
    %v171 = vld [vmem:[%s3 + $0x178] sm:$0xff]
    %v172 = vld [vmem:[%s3 + $0x180] sm:$0xff]
    %v173 = vld [vmem:[%s3 + $0x188] sm:$0xff]
    %v174 = vld [vmem:[%s3 + $0x190] sm:$0xff]
    %v175 = vld [vmem:[%s3 + $0x198] sm:$0xff]
    %v176 = vld [vmem:[%s3 + $0x1a0] sm:$0xff]
    %v177 = vld [vmem:[%s3 + $0x1a8] sm:$0xff]
    %v178 = vld [vmem:[%s3 + $0x1b0] sm:$0xff]
    %v179 = vld [vmem:[%s3 + $0x1b8] sm:$0xff]
    %v180 = vld [vmem:[%s3 + $0x1c0] sm:$0xff]
    %v181 = vld [vmem:[%s3 + $0x1c8] sm:$0xff]
    %v182 = vld [vmem:[%s3 + $0x1d0] sm:$0xff]
    %v183 = vld [vmem:[%s3 + $0x1d8] sm:$0xff]
    %v184 = vld [vmem:[%s3 + $0x1e0] sm:$0xff]
    %v185 = vld [vmem:[%s3 + $0x1e8] sm:$0xff]
    %v186 = vld [vmem:[%s3 + $0x1f0] sm:$0xff]
    %v187 = vld [vmem:[%s3 + $0x1f8] sm:$0xff]
    %v188 = vld [vmem:[%s4] sm:$0x1]
    %v190 = vperm.slane %v188, 0
    %192 = vmatpush.msra.mxu0 %v139
    %193 = vmatpush.msra.mxu0 %v138
    %194 = vmatpush.msra.mxu0 %v137
    %195 = vmatpush.msra.mxu0 %v136
    %196 = vmatpush.msra.mxu0 %v135
    %197 = vmatpush.msra.mxu0 %v134
    %198 = vmatpush.msra.mxu0 %v133
    %199 = vmatpush.msra.mxu0 %v132
    %200 = vmatpush.msra.mxu0 %v131
    %201 = vmatpush.msra.mxu0 %v130
    %202 = vmatpush.msra.mxu0 %v129
    %203 = vmatpush.msra.mxu0 %v128
    %204 = vmatpush.msra.mxu0 %v127
    %205 = vmatpush.msra.mxu0 %v126
    %206 = vmatpush.msra.mxu0 %v125
    %207 = vmatpush.msra.mxu0 %v124
    %208 = vmatmul.f32.gmra.mxu0 %v62
    %v209 = vpop.f32.mrf.mxu0
    %v210 = vadd.f32 %v190, %v209
    %211 = vdwg.mxu0
    %212 = vmatpush.msra.mxu0 %v155
    %213 = vmatpush.msra.mxu0 %v154
    %214 = vmatpush.msra.mxu0 %v153
    %215 = vmatpush.msra.mxu0 %v152
    %216 = vmatpush.msra.mxu0 %v151
    %217 = vmatpush.msra.mxu0 %v150
    %218 = vmatpush.msra.mxu0 %v149
    %219 = vmatpush.msra.mxu0 %v148
    %220 = vmatpush.msra.mxu0 %v147
    %221 = vmatpush.msra.mxu0 %v146
    %222 = vmatpush.msra.mxu0 %v145
    %223 = vmatpush.msra.mxu0 %v144
    %224 = vmatpush.msra.mxu0 %v143
    %225 = vmatpush.msra.mxu0 %v142
    %226 = vmatpush.msra.mxu0 %v141
    %227 = vmatpush.msra.mxu0 %v140
    %228 = vmatmul.f32.gmra.mxu0 %v82
    %v229 = vpop.f32.mrf.mxu0
    %v230 = vadd.f32 %v210, %v229
    %231 = vdwg.mxu0
    %232 = vmatpush.msra.mxu0 %v171
    %233 = vmatpush.msra.mxu0 %v170
    %234 = vmatpush.msra.mxu0 %v169
    %235 = vmatpush.msra.mxu0 %v168
    %236 = vmatpush.msra.mxu0 %v167
    %237 = vmatpush.msra.mxu0 %v166
    %238 = vmatpush.msra.mxu0 %v165
    %239 = vmatpush.msra.mxu0 %v164
    %240 = vmatpush.msra.mxu0 %v163
    %241 = vmatpush.msra.mxu0 %v162
    %242 = vmatpush.msra.mxu0 %v161
    %243 = vmatpush.msra.mxu0 %v160
    %244 = vmatpush.msra.mxu0 %v159
    %245 = vmatpush.msra.mxu0 %v158
    %246 = vmatpush.msra.mxu0 %v157
    %247 = vmatpush.msra.mxu0 %v156
    %248 = vmatmul.f32.gmra.mxu0 %v102
    %v249 = vpop.f32.mrf.mxu0
    %v250 = vadd.f32 %v230, %v249
    %251 = vdwg.mxu0
    %252 = vmatpush.msra.mxu0 %v187
    %253 = vmatpush.msra.mxu0 %v186
    %254 = vmatpush.msra.mxu0 %v185
    %255 = vmatpush.msra.mxu0 %v184
    %256 = vmatpush.msra.mxu0 %v183
    %257 = vmatpush.msra.mxu0 %v182
    %258 = vmatpush.msra.mxu0 %v181
    %259 = vmatpush.msra.mxu0 %v180
    %260 = vmatpush.msra.mxu0 %v179
    %261 = vmatpush.msra.mxu0 %v178
    %262 = vmatpush.msra.mxu0 %v177
    %263 = vmatpush.msra.mxu0 %v176
    %264 = vmatpush.msra.mxu0 %v175
    %265 = vmatpush.msra.mxu0 %v174
    %266 = vmatpush.msra.mxu0 %v173
    %267 = vmatpush.msra.mxu0 %v172
    %268 = vmatmul.f32.gmra.mxu0 %v122
    %v269 = vpop.f32.mrf.mxu0
    %v270 = vadd.f32 %v250, %v269
    %271 = vdwg.mxu0
    %vm272 = vcmask 64512
    %273 = vst.msk [vmem:[#allocation2] sm:$0xff] %vm272, %v270
    // Predicated region
    $region22: #{tpu_custom_call.1} parent=1 // pred_check
      _
    $region23: #{tpu_custom_call.1} parent=1 // pred_check_branch
      %275 = sbr.rel (0) target = $region25
    $region24: #{tpu_custom_call.1} parent=1 // pred_region
      %277 = vsyncadd [#allocation3], 0
      %s279 = sshll.u32 [#allocation2], 4
      %s280 = int_to_ptr.vmem [resolvable:$true] %s279
      %s281 = sshll.u32 %s5, 4
      %s282 = int_to_ptr.hbm [resolvable:$true] %s281
      %284 = dma.vmem_to_hbm [thread:$0]  %s280, 128, %s282, [#allocation3]
    $region25: #{tpu_custom_call.1} parent=1 // pred_fallthru
      _
    // Predicated region
    $region26: #{tpu_custom_call.1} parent=1 // pred_check
      _
    $region27: #{tpu_custom_call.1} parent=1 // pred_check_branch
      %286 = sbr.rel (0) target = $region29
    $region28: #{tpu_custom_call.1} parent=1 // pred_region
      %288 = dma.done [#allocation3], 128
    $region29: #{tpu_custom_call.1} parent=1 // pred_fallthru
      _
    %289 = vsyncpa [#allocation3], 1

</llo_original>
